<compile_context>
chip_gen: v6e
topology: v6e:2x2x1
jax: 0.10.0
libtpu: 0.0.40
codegen_flags: <defaults>
</compile_context>

<pallas_src>
import numpy as np
import jax
import jax.numpy as jnp
from jax.experimental import pallas as pl
from jax.experimental.pallas import tpu as pltpu


# ----------------------------------------------------------------------------
# Small conv helper (prep-time and pure-JAX reference only; never in hot path).
# ----------------------------------------------------------------------------
def _conv_ref(x, w, b, padding):
    out = jax.lax.conv_general_dilated(
        x, w, window_strides=(1, 1),
        padding=[(padding[0], padding[0]), (padding[1], padding[1])],
        dimension_numbers=("NCHW", "OIHW", "NCHW"))
    return out + b[None, :, None, None]


# ----------------------------------------------------------------------------
# One-time parameter preparation (all input-independent work hoisted here).
# ----------------------------------------------------------------------------
def precompute_constants(params):
    f32 = jnp.float32
    T = params["reference_signals"].shape[-1]

    # ---- reference branch: input independent -> compute once at B=1 ---------
    ref = params["reference_signals"].astype(f32)                  # (1, Ch, Cls, T)
    yr = _conv_ref(ref, params["rconv1_w"].astype(f32),
                   params["rconv1_b"].astype(f32), (0, 4))
    yr = _conv_ref(yr, params["rconv2_w"].astype(f32),
                   params["rconv2_b"].astype(f32), (0, 4))
    yv = yr[0, 0]                                                  # (Cls, T)
    # fold corr_tt (per-class template norms) into the templates
    yvn = yv * jax.lax.rsqrt(jnp.sum(yv * yv, axis=1, keepdims=True))
    # fold the dense layer in as well (per-sample 1/||x|| commutes with it)
    wdt = params["dense_w"].T.astype(f32)                          # (Cls, Cls)
    ytw = yvn.T @ wdt                                              # (T, Cls)

    # ---- fold the purely-linear signals branch sconv1∘sconv2∘sconv3 into a
    #      single (Ch x 9)-tap filter + scalar bias (exact, eval mode) --------
    w1 = params["sconv1_w"][:, 0].astype(f32)        # (16, 9, 9)  [co, row i, time j]
    b1 = params["sconv1_b"].astype(f32)              # (16,)
    w2 = params["sconv2_w"][0, :, :, 0].astype(f32)  # (16, 9)     [c, kh2]
    b2 = params["sconv2_b"][0].astype(f32)
    w3 = params["sconv3_w"][0, 0, :, 0].astype(f32)  # (9,)        [kh3]
    b3 = params["sconv3_b"][0].astype(f32)

    idx = np.arange(9)
    # m[a, b, r] = 1 iff a + b == r + 4   (pad-4 alignment of composed taps)
    m = jnp.asarray((idx[:, None, None] + idx[None, :, None]
                     == idx[None, None, :] + 4).astype(np.float32))   # (9, 9, 9)
    w_eff = jnp.einsum("ca,b,abr->cr", w2, w3, m)                  # (16, 9)
    kc = jnp.einsum("ch,cij,hir->jr", w_eff, w1, m)                # (9 time-tap, 9 row)
    kct = kc.T                                                     # (Ch, 9)  [row, tap]
    btot = b3 + b2 * jnp.sum(w3) + jnp.einsum("ch,c->", w_eff, b1)  # scalar

    # ---- express the folded (Ch x 9) filter as a Toeplitz matmul weight -----
    # xv[b, t] = sum_{c,s} x[b, c, s] * kct[c, s - t + 4]   (valid taps only),
    # i.e. xv = x.reshape(B, Ch*T) @ W,  W[c*T + s, t] = kct[c, s - t + 4].
    Ch = kct.shape[0]
    s_idx = np.arange(T)[:, None]
    t_idx = np.arange(T)[None, :]
    tap = s_idx - t_idx + 4                                        # (T, T)
    valid = jnp.asarray((tap >= 0) & (tap < 9))
    tap_c = np.clip(tap, 0, 8)
    w_toep = jnp.where(valid[None, :, :], kct[:, tap_c], 0.0)      # (Ch, T, T)
    w_toep = w_toep.reshape(Ch * T, T).astype(f32)

    # ---- pack the two tiny bias constants into one operand ------------------
    n_cls = params["dense_b"].shape[0]
    misc = jnp.concatenate(
        [params["dense_b"].reshape(1, -1).astype(f32),             # row 0: dense bias
         btot * jnp.ones((1, n_cls), f32)], axis=0)                # row 1: folded conv bias

    return {"w_toeplitz": w_toep,      # (Ch*T, T)
            "ytw": ytw.astype(f32),    # (T, Cls)  templates(normed) ∘ dense
            "misc": misc}              # (2, Cls)


# ----------------------------------------------------------------------------
# Fused per-inference Pallas kernel: two MXU matmuls + one lane reduce + rsqrt.
# ----------------------------------------------------------------------------
def _convca_fused_kernel(x_ref, w_ref, ytw_ref, misc_ref, o_ref):
    # signals branch: folded conv as a single MXU matmul over the packed batch
    xv = jnp.dot(x_ref[...], w_ref[...], preferred_element_type=jnp.float32)
    xv = xv + misc_ref[1:2, 0:1]                                   # folded conv bias, (B, T)

    # per-sample 1/||xv||: one lane reduce + EUP rsqrt.  All-zero input gives
    # inf, matching the reference's division (no epsilon, by design).
    inv_x = jax.lax.rsqrt(jnp.sum(xv * xv, axis=1, keepdims=True))  # (B, 1)

    # correlation + dense head fused into one (B,T)@(T,Cls) MXU matmul
    logits = jnp.dot(xv, ytw_ref[...], preferred_element_type=jnp.float32)
    o_ref[...] = (logits * inv_x + misc_ref[0:1, :]).astype(o_ref.dtype)


def convca_forward(x, prep):
    """Per-inference path: a single fused pallas_call, one grid step for the batch."""
    B = x.shape[0]
    Ch, T = x.shape[2], x.shape[3]
    Cls = prep["ytw"].shape[1]
    K = Ch * T

    # Pack the batch; pad rows up to a sublane multiple (8) for a clean MXU lhs.
    Bp = ((B + 7) // 8) * 8
    x_flat = x[:, 0].reshape(B, K).astype(jnp.float32)
    if Bp != B:
        x_flat = jnp.pad(x_flat, ((0, Bp - B), (0, 0)))

    out = pl.pallas_call(
        _convca_fused_kernel,
        out_shape=jax.ShapeDtypeStruct((Bp, Cls), jnp.float32),
        grid=(1,),                                   # single step: batch is packed
        in_specs=[
            pl.BlockSpec((Bp, K), lambda i: (0, 0)),      # packed input
            pl.BlockSpec((K, T), lambda i: (0, 0)),       # Toeplitz conv weight
            pl.BlockSpec((T, Cls), lambda i: (0, 0)),     # templates ∘ dense
            pl.BlockSpec((2, Cls), lambda i: (0, 0)),     # [dense_b ; conv bias]
        ],
        out_specs=pl.BlockSpec((Bp, Cls), lambda i: (0, 0)),
        compiler_params=pltpu.CompilerParams(
            dimension_semantics=("arbitrary",)),
        # NOTE: for large B on v7x, switch to grid=(2,) with ceil(B/2) rows per
        # step and dimension_semantics=("parallel",) to use both TensorCores.
    )(x_flat, prep["w_toeplitz"], prep["ytw"], prep["misc"])
    return out[:B]


# ----------------------------------------------------------------------------
# Pure-JAX reference of the ORIGINAL (unfolded) module, for correctness check.
# ----------------------------------------------------------------------------
def convca_forward_ref(x, params):
    xs = x[:, 0][:, None]
    xs = _conv_ref(xs, params["sconv1_w"], params["sconv1_b"], (4, 4))
    xs = _conv_ref(xs, params["sconv2_w"], params["sconv2_b"], (4, 0))
    xs = _conv_ref(xs, params["sconv3_w"], params["sconv3_b"], (0, 0))
    B = x.shape[0]
    ref = jnp.tile(params["reference_signals"], (B, 1, 1, 1))
    yr = _conv_ref(ref, params["rconv1_w"], params["rconv1_b"], (0, 4))
    yr = _conv_ref(yr, params["rconv2_w"], params["rconv2_b"], (0, 4))
    X = xs                                   # (B,1,1,T)
    Tm = jnp.swapaxes(yr, -1, -2)            # (B,1,T,Cls)
    corr_xt = jnp.matmul(X, Tm)
    corr_xx = jnp.sum(jnp.square(X), -1, keepdims=True)
    corr_tt = jnp.sum(jnp.square(Tm), -2, keepdims=True)
    corr = corr_xt / (jnp.sqrt(corr_xx) * jnp.sqrt(corr_tt))
    r0 = jnp.squeeze(corr)                   # (B, Cls)
    return r0 @ params["dense_w"].T + params["dense_b"]


# ----------------------------------------------------------------------------
if __name__ == "__main__":
    B, n_subbands, n_channels, T = 2, 2, 9, 64
    n_classes = 40   # fixed by nn.Linear(40, 40) / reference signal count

    key = jax.random.PRNGKey(0)
    ks = jax.random.split(key, 14)

    def init(k, shape, scale):
        return scale * jax.random.normal(k, shape, dtype=jnp.float32)

    params = {
        "sconv1_w": init(ks[0], (16, 1, 9, 9), 1.0 / np.sqrt(81.0)),
        "sconv1_b": init(ks[1], (16,), 0.1),
        "sconv2_w": init(ks[2], (1, 16, n_channels, 1), 1.0 / np.sqrt(144.0)),
        "sconv2_b": init(ks[3], (1,), 0.1),
        "sconv3_w": init(ks[4], (1, 1, n_channels, 1), 1.0 / np.sqrt(9.0)),
        "sconv3_b": init(ks[5], (1,), 0.1),
        "rconv1_w": init(ks[6], (40, n_channels, 1, 9), 1.0 / np.sqrt(81.0)),
        "rconv1_b": init(ks[7], (40,), 0.1),
        "rconv2_w": init(ks[8], (1, 40, 1, 9), 1.0 / np.sqrt(360.0)),
        "rconv2_b": init(ks[9], (1,), 0.1),
        "dense_w": init(ks[10], (40, 40), 1.0 / np.sqrt(40.0)),
        "dense_b": init(ks[11], (40,), 0.1),
        "reference_signals": init(ks[12], (1, n_channels, n_classes, T), 1.0),
    }
    x = jax.random.normal(ks[13], (B, n_subbands, n_channels, T), dtype=jnp.float32)

    # One-time parameter preparation (reference branch + all linear folds).
    prep = jax.tree_util.tree_map(jax.block_until_ready, precompute_constants(params))

    # Per-inference path: a single fused Pallas kernel, one grid step.
    out = jax.block_until_ready(convca_forward(x, prep))
    ref_out = convca_forward_ref(x, params)

    assert out.shape == (B, n_classes), out.shape
    np.testing.assert_allclose(np.asarray(out), np.asarray(ref_out),
                               rtol=2e-3, atol=2e-3)
    print("KERNEL_OK")
</pallas_src>

<mosaic_0001>
module attributes {stable_mosaic.version = 11 : i64} {
  func.func @_convca_fused_kernel(%arg0: i32, %arg1: memref<8x576xf32, #tpu.memory_space<vmem>>, %arg2: memref<576x64xf32, #tpu.memory_space<vmem>>, %arg3: memref<64x40xf32, #tpu.memory_space<vmem>>, %arg4: memref<2x40xf32, #tpu.memory_space<vmem>>, %arg5: memref<8x40xf32, #tpu.memory_space<vmem>>) attributes {dimension_semantics = [#tpu.dimension_semantics<arbitrary>], iteration_bounds = array<i64: 1>, scalar_prefetch = 0 : i64, scratch_operands = 0 : i64, tpu.core_type = #tpu.core_type<tc>, window_params = [{pipeline_mode = #tpu.pipeline_mode<synchronous>, transform_indices = @transform_0, window_bounds = array<i64: 8, 576>}, {pipeline_mode = #tpu.pipeline_mode<synchronous>, transform_indices = @transform_1, window_bounds = array<i64: 576, 64>}, {pipeline_mode = #tpu.pipeline_mode<synchronous>, transform_indices = @transform_2, window_bounds = array<i64: 64, 40>}, {pipeline_mode = #tpu.pipeline_mode<synchronous>, transform_indices = @transform_3, window_bounds = array<i64: 2, 40>}, {pipeline_mode = #tpu.pipeline_mode<synchronous>, transform_indices = @transform_4, window_bounds = array<i64: 8, 40>}]} {
    %c0 = arith.constant 0 : index
    %c0_0 = arith.constant 0 : index
    %0 = vector.load %arg1[%c0, %c0_0] : memref<8x576xf32, #tpu.memory_space<vmem>>, vector<8x576xf32>
    %c0_1 = arith.constant 0 : index
    %c0_2 = arith.constant 0 : index
    %1 = vector.load %arg2[%c0_1, %c0_2] : memref<576x64xf32, #tpu.memory_space<vmem>>, vector<576x64xf32>
    %cst = arith.constant dense<0.000000e+00> : vector<8x64xf32>
    %2 = tpu.matmul %0, %1, %cst {dimension_numbers = #tpu.dot_dimension_numbers<[1], [0], [0], [1], [0, 0, 1, 1], [], []>} : vector<8x576xf32>, vector<576x64xf32>, vector<8x64xf32> -> vector<8x64xf32>
    %c1 = arith.constant 1 : index
    %c0_3 = arith.constant 0 : index
    %3 = vector.load %arg4[%c1, %c0_3] : memref<2x40xf32, #tpu.memory_space<vmem>>, vector<1x1xf32>
    %4 = vector.broadcast %3 : vector<1x1xf32> to vector<8x64xf32>
    %5 = arith.addf %2, %4 : vector<8x64xf32>
    %6 = arith.mulf %5, %5 : vector<8x64xf32>
    %cst_4 = arith.constant dense<0.000000e+00> : vector<8xf32>
    %7 = vector.multi_reduction <add>, %6, %cst_4 [1] : vector<8x64xf32> to vector<8xf32>
    %8 = vector.shape_cast %7 : vector<8xf32> to vector<8x1xf32>
    %9 = math.rsqrt %8 : vector<8x1xf32>
    %c0_5 = arith.constant 0 : index
    %c0_6 = arith.constant 0 : index
    %10 = vector.load %arg3[%c0_5, %c0_6] : memref<64x40xf32, #tpu.memory_space<vmem>>, vector<64x40xf32>
    %cst_7 = arith.constant dense<0.000000e+00> : vector<8x40xf32>
    %11 = tpu.matmul %5, %10, %cst_7 {dimension_numbers = #tpu.dot_dimension_numbers<[1], [0], [0], [1], [0, 0, 1, 1], [], []>} : vector<8x64xf32>, vector<64x40xf32>, vector<8x40xf32> -> vector<8x40xf32>
    %12 = vector.broadcast %9 : vector<8x1xf32> to vector<8x40xf32>
    %13 = arith.mulf %11, %12 : vector<8x40xf32>
    %c0_8 = arith.constant 0 : index
    %c0_9 = arith.constant 0 : index
    %14 = vector.load %arg4[%c0_8, %c0_9] : memref<2x40xf32, #tpu.memory_space<vmem>>, vector<1x40xf32>
    %15 = vector.broadcast %14 : vector<1x40xf32> to vector<8x40xf32>
    %16 = arith.addf %13, %15 : vector<8x40xf32>
    %c0_10 = arith.constant 0 : index
    %c0_11 = arith.constant 0 : index
    %17 = vector.load %arg5[%c0_10, %c0_11] : memref<8x40xf32, #tpu.memory_space<vmem>>, vector<8x40xf32>
    tpu.vector_store %arg5[%c0_10, %c0_11], %16 {strides = array<i32>} : memref<8x40xf32, #tpu.memory_space<vmem>>, vector<8x40xf32>,
    return
  }
  func.func @transform_0(%arg0: i32) -> (i32, i32) {
    %c0_i32 = arith.constant 0 : i32
    %c0_i32_0 = arith.constant 0 : i32
    %c0_i32_1 = arith.constant 0 : i32
    return %c0_i32, %c0_i32_0 : i32, i32
  }
  func.func @transform_1(%arg0: i32) -> (i32, i32) {
    %c0_i32 = arith.constant 0 : i32
    %c0_i32_0 = arith.constant 0 : i32
    %c0_i32_1 = arith.constant 0 : i32
    return %c0_i32, %c0_i32_0 : i32, i32
  }
  func.func @transform_2(%arg0: i32) -> (i32, i32) {
    %c0_i32 = arith.constant 0 : i32
    %c0_i32_0 = arith.constant 0 : i32
    %c0_i32_1 = arith.constant 0 : i32
    return %c0_i32, %c0_i32_0 : i32, i32
  }
  func.func @transform_3(%arg0: i32) -> (i32, i32) {
    %c0_i32 = arith.constant 0 : i32
    %c0_i32_0 = arith.constant 0 : i32
    %c0_i32_1 = arith.constant 0 : i32
    return %c0_i32, %c0_i32_0 : i32, i32
  }
  func.func @transform_4(%arg0: i32) -> (i32, i32) {
    %c0_i32 = arith.constant 0 : i32
    %c0_i32_0 = arith.constant 0 : i32
    %c0_i32_1 = arith.constant 0 : i32
    return %c0_i32, %c0_i32_0 : i32, i32
  }
}

</mosaic_0001>

<llo_original>
// kernel: tpu_custom_call.1
$region0: #{tpu_custom_call.1}
  #allocation0 [shape = 'u32[]', space=smem, size = 0x4, offset = 0x4, fixed_abs, tag = 'smem constant byte address 0x4 - core index']
  #allocation1 [shape = 'u32[144,128]{1,0:T(1,128)}', space=vmem, size = 0x12000, scoped, tag = 'internal scratch']
  %s0 = inlined_call_operand.vmem [shape: f32[8,576], index: 0, kind: input, shape index: {}]
  %s1 = inlined_call_operand.vmem [shape: f32[576,64], index: 1, kind: input, shape index: {}]
  %s2 = inlined_call_operand.vmem [shape: f32[64,40], index: 2, kind: input, shape index: {}]
  %s3 = inlined_call_operand.vmem [shape: f32[2,40], index: 3, kind: input, shape index: {}]
  %s4 = inlined_call_operand.hbm [shape: f32[8,40], index: 4, kind: output, shape index: {}]
  %s5 = sld [smem:[#allocation0]]
  $region26: #{tpu_custom_call.1} parent=0
    _
  %s7 = ssub.s32 1, %s5
  %s8 = scalar_select 0, %s7, %s5
  $region1: #{tpu_custom_call.1} parent=0
    #allocation2 [shape = 'u8[4096]{0}', space=vmem, size = 0x1000, scoped, tag = 'output window, operand 0, single buffered']
    #allocation3 [shape = 's32[1]{0}', space=sflag, size = 0x4, scoped, tag = 'scoped memory for tpu_custom_call.1']
    %9 = vsyncpa [#allocation3], 0
    // Predicated region
    $region2: #{tpu_custom_call.1} parent=1 // pred_check
      _
    $region3: #{tpu_custom_call.1} parent=1 // pred_check_branch
      %11 = sbr.rel (0) target = $region5
    $region4: #{tpu_custom_call.1} parent=1 // pred_region
      _
    $region5: #{tpu_custom_call.1} parent=1 // pred_fallthru
      _
    // Predicated region
    $region6: #{tpu_custom_call.1} parent=1 // pred_check
      _
    $region7: #{tpu_custom_call.1} parent=1 // pred_check_branch
      %13 = sbr.rel (0) target = $region9
    $region8: #{tpu_custom_call.1} parent=1 // pred_region
      _
    $region9: #{tpu_custom_call.1} parent=1 // pred_fallthru
      _
    // Predicated region
    $region10: #{tpu_custom_call.1} parent=1 // pred_check
      _
    $region11: #{tpu_custom_call.1} parent=1 // pred_check_branch
      %15 = sbr.rel (0) target = $region13
    $region12: #{tpu_custom_call.1} parent=1 // pred_region
      _
    $region13: #{tpu_custom_call.1} parent=1 // pred_fallthru
      _
    // Predicated region
    $region14: #{tpu_custom_call.1} parent=1 // pred_check
      _
    $region15: #{tpu_custom_call.1} parent=1 // pred_check_branch
      %17 = sbr.rel (0) target = $region17
    $region16: #{tpu_custom_call.1} parent=1 // pred_region
      _
    $region17: #{tpu_custom_call.1} parent=1 // pred_fallthru
      _
    %v18 = vld [vmem:[%s0] sm:$0xff]
    %v19 = vld [vmem:[%s0 + $0x8] sm:$0xff]
    %v20 = vld [vmem:[%s0 + $0x10] sm:$0xff]
    %v21 = vld [vmem:[%s0 + $0x18] sm:$0xff]
    %v22 = vld [vmem:[%s0 + $0x20] sm:$0xff]
    %v23 = vld [vmem:[%s1] sm:$0xff]
    %v24 = vld [vmem:[%s1 + $0x8] sm:$0xff]
    %v25 = vld [vmem:[%s1 + $0x10] sm:$0xff]
    %v26 = vld [vmem:[%s1 + $0x18] sm:$0xff]
    %v27 = vld [vmem:[%s1 + $0x20] sm:$0xff]
    %v28 = vld [vmem:[%s1 + $0x28] sm:$0xff]
    %v29 = vld [vmem:[%s1 + $0x30] sm:$0xff]
    %v30 = vld [vmem:[%s1 + $0x38] sm:$0xff]
    %v31 = vld [vmem:[%s1 + $0x40] sm:$0xff]
    %v32 = vld [vmem:[%s1 + $0x48] sm:$0xff]
    %v33 = vld [vmem:[%s1 + $0x50] sm:$0xff]
    %v34 = vld [vmem:[%s1 + $0x58] sm:$0xff]
    %v35 = vld [vmem:[%s1 + $0x60] sm:$0xff]
    %v36 = vld [vmem:[%s1 + $0x68] sm:$0xff]
    %v37 = vld [vmem:[%s1 + $0x70] sm:$0xff]
    %v38 = vld [vmem:[%s1 + $0x78] sm:$0xff]
    %v39 = vld [vmem:[%s1 + $0x80] sm:$0xff]
    %v40 = vld [vmem:[%s1 + $0x88] sm:$0xff]
    %v41 = vld [vmem:[%s1 + $0x90] sm:$0xff]
    %v42 = vld [vmem:[%s1 + $0x98] sm:$0xff]
    %v43 = vld [vmem:[%s1 + $0xa0] sm:$0xff]
    %v44 = vld [vmem:[%s1 + $0xa8] sm:$0xff]
    %v45 = vld [vmem:[%s1 + $0xb0] sm:$0xff]
    %v46 = vld [vmem:[%s1 + $0xb8] sm:$0xff]
    %v47 = vld [vmem:[%s1 + $0xc0] sm:$0xff]
    %v48 = vld [vmem:[%s1 + $0xc8] sm:$0xff]
    %v49 = vld [vmem:[%s1 + $0xd0] sm:$0xff]
    %v50 = vld [vmem:[%s1 + $0xd8] sm:$0xff]
    %v51 = vld [vmem:[%s1 + $0xe0] sm:$0xff]
    %v52 = vld [vmem:[%s1 + $0xe8] sm:$0xff]
    %v53 = vld [vmem:[%s1 + $0xf0] sm:$0xff]
    %v54 = vld [vmem:[%s1 + $0xf8] sm:$0xff]
    %v55 = vld [vmem:[%s1 + $0x100] sm:$0xff]
    %v56 = vld [vmem:[%s1 + $0x108] sm:$0xff]
    %v57 = vld [vmem:[%s1 + $0x110] sm:$0xff]
    %v58 = vld [vmem:[%s1 + $0x118] sm:$0xff]
    %v59 = vld [vmem:[%s1 + $0x120] sm:$0xff]
    %v60 = vld [vmem:[%s1 + $0x128] sm:$0xff]
    %v61 = vld [vmem:[%s1 + $0x130] sm:$0xff]
    %v62 = vld [vmem:[%s1 + $0x138] sm:$0xff]
    %v63 = vld [vmem:[%s1 + $0x140] sm:$0xff]
    %v64 = vld [vmem:[%s1 + $0x148] sm:$0xff]
    %v65 = vld [vmem:[%s1 + $0x150] sm:$0xff]
    %v66 = vld [vmem:[%s1 + $0x158] sm:$0xff]
    %v67 = vld [vmem:[%s1 + $0x160] sm:$0xff]
    %v68 = vld [vmem:[%s1 + $0x168] sm:$0xff]
    %v69 = vld [vmem:[%s1 + $0x170] sm:$0xff]
    %v70 = vld [vmem:[%s1 + $0x178] sm:$0xff]
    %v71 = vld [vmem:[%s1 + $0x180] sm:$0xff]
    %v72 = vld [vmem:[%s1 + $0x188] sm:$0xff]
    %v73 = vld [vmem:[%s1 + $0x190] sm:$0xff]
    %v74 = vld [vmem:[%s1 + $0x198] sm:$0xff]
    %v75 = vld [vmem:[%s1 + $0x1a0] sm:$0xff]
    %v76 = vld [vmem:[%s1 + $0x1a8] sm:$0xff]
    %v77 = vld [vmem:[%s1 + $0x1b0] sm:$0xff]
    %v78 = vld [vmem:[%s1 + $0x1b8] sm:$0xff]
    %v79 = vld [vmem:[%s1 + $0x1c0] sm:$0xff]
    %v80 = vld [vmem:[%s1 + $0x1c8] sm:$0xff]
    %v81 = vld [vmem:[%s1 + $0x1d0] sm:$0xff]
    %v82 = vld [vmem:[%s1 + $0x1d8] sm:$0xff]
    %v83 = vld [vmem:[%s1 + $0x1e0] sm:$0xff]
    %v84 = vld [vmem:[%s1 + $0x1e8] sm:$0xff]
    %v85 = vld [vmem:[%s1 + $0x1f0] sm:$0xff]
    %v86 = vld [vmem:[%s1 + $0x1f8] sm:$0xff]
    %v87 = vld [vmem:[%s1 + $0x200] sm:$0xff]
    %v88 = vld [vmem:[%s1 + $0x208] sm:$0xff]
    %v89 = vld [vmem:[%s1 + $0x210] sm:$0xff]
    %v90 = vld [vmem:[%s1 + $0x218] sm:$0xff]
    %v91 = vld [vmem:[%s1 + $0x220] sm:$0xff]
    %v92 = vld [vmem:[%s1 + $0x228] sm:$0xff]
    %v93 = vld [vmem:[%s1 + $0x230] sm:$0xff]
    %v94 = vld [vmem:[%s1 + $0x238] sm:$0xff]
    %v95 = vld [vmem:[%s3 + $0x1] sm:$0x1]
    %s97 = vtos %v95
    %v98 = vstv %s97
    %vm100 = vcmask 523264
    %v102 = vsel %vm100, %v22, 0
    %104 = vmatprep.subr.mxu0 0.0
    %105 = vmatpush1.msra.mxu0 %v38
    %106 = vmatprep.subr.mxu0 0.0
    %107 = vmatpush1.msra.mxu0 %v37
    %108 = vmatprep.subr.mxu0 0.0
    %109 = vmatpush1.msra.mxu0 %v36
    %110 = vmatprep.subr.mxu0 0.0
    %111 = vmatpush1.msra.mxu0 %v35
    %112 = vmatprep.subr.mxu0 0.0
    %113 = vmatpush1.msra.mxu0 %v34
    %114 = vmatprep.subr.mxu0 0.0
    %115 = vmatpush1.msra.mxu0 %v33
    %116 = vmatprep.subr.mxu0 0.0
    %117 = vmatpush1.msra.mxu0 %v32
    %118 = vmatprep.subr.mxu0 0.0
    %119 = vmatpush1.msra.mxu0 %v31
    %120 = vmatprep.subr.mxu0 0.0
    %121 = vmatpush1.msra.mxu0 %v30
    %122 = vmatprep.subr.mxu0 0.0
    %123 = vmatpush1.msra.mxu0 %v29
    %124 = vmatprep.subr.mxu0 0.0
    %125 = vmatpush1.msra.mxu0 %v28
    %126 = vmatprep.subr.mxu0 0.0
    %127 = vmatpush1.msra.mxu0 %v27
    %128 = vmatprep.subr.mxu0 0.0
    %129 = vmatpush1.msra.mxu0 %v26
    %130 = vmatprep.subr.mxu0 0.0
    %131 = vmatpush1.msra.mxu0 %v25
    %132 = vmatprep.subr.mxu0 0.0
    %133 = vmatpush1.msra.mxu0 %v24
    %134 = vmatprep.subr.mxu0 0.0
    %135 = vmatpush1.msra.mxu0 %v23
    %136 = vmatprep.subr.mxu0 0.0
    %137 = vmatpush2.msra.mxu0 %v54
    %138 = vmatprep.subr.mxu0 0.0
    %139 = vmatpush2.msra.mxu0 %v53
    %140 = vmatprep.subr.mxu0 0.0
    %141 = vmatpush2.msra.mxu0 %v52
    %142 = vmatprep.subr.mxu0 0.0
    %143 = vmatpush2.msra.mxu0 %v51
    %144 = vmatprep.subr.mxu0 0.0
    %145 = vmatpush2.msra.mxu0 %v50
    %146 = vmatprep.subr.mxu0 0.0
    %147 = vmatpush2.msra.mxu0 %v49
    %148 = vmatprep.subr.mxu0 0.0
    %149 = vmatpush2.msra.mxu0 %v48
    %150 = vmatprep.subr.mxu0 0.0
    %151 = vmatpush2.msra.mxu0 %v47
    %152 = vmatprep.subr.mxu0 0.0
    %153 = vmatpush2.msra.mxu0 %v46
    %154 = vmatprep.subr.mxu0 0.0
    %155 = vmatpush2.msra.mxu0 %v45
    %156 = vmatprep.subr.mxu0 0.0
    %157 = vmatpush2.msra.mxu0 %v44
    %158 = vmatprep.subr.mxu0 0.0
    %159 = vmatpush2.msra.mxu0 %v43
    %160 = vmatprep.subr.mxu0 0.0
    %161 = vmatpush2.msra.mxu0 %v42
    %162 = vmatprep.subr.mxu0 0.0
    %163 = vmatpush2.msra.mxu0 %v41
    %164 = vmatprep.subr.mxu0 0.0
    %165 = vmatpush2.msra.mxu0 %v40
    %166 = vmatprep.subr.mxu0 0.0
    %167 = vmatpush2.msra.mxu0 %v39
    %168 = vmatprep.mubr.f32.mxu0 %v19
    %169 = vmatmul.mubr.f32.gmra.mxu0 %v18
    %v170 = vpop.f32.mrf.mxu0
    %v171 = vadd.f32 %v98, %v170
    %v172 = vpop.f32.mrf.mxu0
    %173 = vdwg.mxu0
    %174 = vmatprep.subr.mxu0 0.0
    %175 = vmatpush1.msra.mxu0 %v70
    %176 = vmatprep.subr.mxu0 0.0
    %177 = vmatpush1.msra.mxu0 %v69
    %178 = vmatprep.subr.mxu0 0.0
    %179 = vmatpush1.msra.mxu0 %v68
    %180 = vmatprep.subr.mxu0 0.0
    %181 = vmatpush1.msra.mxu0 %v67
    %182 = vmatprep.subr.mxu0 0.0
    %183 = vmatpush1.msra.mxu0 %v66
    %184 = vmatprep.subr.mxu0 0.0
    %185 = vmatpush1.msra.mxu0 %v65
    %186 = vmatprep.subr.mxu0 0.0
    %187 = vmatpush1.msra.mxu0 %v64
    %188 = vmatprep.subr.mxu0 0.0
    %189 = vmatpush1.msra.mxu0 %v63
    %190 = vmatprep.subr.mxu0 0.0
    %191 = vmatpush1.msra.mxu0 %v62
    %192 = vmatprep.subr.mxu0 0.0
    %193 = vmatpush1.msra.mxu0 %v61
    %194 = vmatprep.subr.mxu0 0.0
    %195 = vmatpush1.msra.mxu0 %v60
    %196 = vmatprep.subr.mxu0 0.0
    %197 = vmatpush1.msra.mxu0 %v59
    %198 = vmatprep.subr.mxu0 0.0
    %199 = vmatpush1.msra.mxu0 %v58
    %200 = vmatprep.subr.mxu0 0.0
    %201 = vmatpush1.msra.mxu0 %v57
    %202 = vmatprep.subr.mxu0 0.0
    %203 = vmatpush1.msra.mxu0 %v56
    %204 = vmatprep.subr.mxu0 0.0
    %205 = vmatpush1.msra.mxu0 %v55
    %206 = vmatprep.subr.mxu0 0.0
    %207 = vmatpush2.msra.mxu0 %v86
    %208 = vmatprep.subr.mxu0 0.0
    %209 = vmatpush2.msra.mxu0 %v85
    %210 = vmatprep.subr.mxu0 0.0
    %211 = vmatpush2.msra.mxu0 %v84
    %212 = vmatprep.subr.mxu0 0.0
    %213 = vmatpush2.msra.mxu0 %v83
    %214 = vmatprep.subr.mxu0 0.0
    %215 = vmatpush2.msra.mxu0 %v82
    %216 = vmatprep.subr.mxu0 0.0
    %217 = vmatpush2.msra.mxu0 %v81
    %218 = vmatprep.subr.mxu0 0.0
    %219 = vmatpush2.msra.mxu0 %v80
    %220 = vmatprep.subr.mxu0 0.0
    %221 = vmatpush2.msra.mxu0 %v79
    %222 = vmatprep.subr.mxu0 0.0
    %223 = vmatpush2.msra.mxu0 %v78
    %224 = vmatprep.subr.mxu0 0.0
    %225 = vmatpush2.msra.mxu0 %v77
    %226 = vmatprep.subr.mxu0 0.0
    %227 = vmatpush2.msra.mxu0 %v76
    %228 = vmatprep.subr.mxu0 0.0
    %229 = vmatpush2.msra.mxu0 %v75
    %230 = vmatprep.subr.mxu0 0.0
    %231 = vmatpush2.msra.mxu0 %v74
    %232 = vmatprep.subr.mxu0 0.0
    %233 = vmatpush2.msra.mxu0 %v73
    %234 = vmatprep.subr.mxu0 0.0
    %235 = vmatpush2.msra.mxu0 %v72
    %236 = vmatprep.subr.mxu0 0.0
    %237 = vmatpush2.msra.mxu0 %v71
    %238 = vmatprep.mubr.f32.mxu0 %v21
    %239 = vmatmul.mubr.f32.gmra.mxu0 %v20
    %v240 = vpop.f32.mrf.mxu0
    %v241 = vadd.f32 %v171, %v240
    %v242 = vpop.f32.mrf.mxu0
    %243 = vdwg.mxu0
    %244 = vmatprep.subr.mxu0 0.0
    %245 = vmatpush1.msra.mxu0 0.0
    %246 = vmatprep.subr.mxu0 0.0
    %247 = vmatpush1.msra.mxu0 0.0
    %248 = vmatprep.subr.mxu0 0.0
    %249 = vmatpush1.msra.mxu0 0.0
    %250 = vmatprep.subr.mxu0 0.0
    %251 = vmatpush1.msra.mxu0 0.0
    %252 = vmatprep.subr.mxu0 0.0
    %253 = vmatpush1.msra.mxu0 0.0
    %254 = vmatprep.subr.mxu0 0.0
    %255 = vmatpush1.msra.mxu0 0.0
    %256 = vmatprep.subr.mxu0 0.0
    %257 = vmatpush1.msra.mxu0 0.0
    %258 = vmatprep.subr.mxu0 0.0
    %259 = vmatpush1.msra.mxu0 0.0
    %260 = vmatprep.subr.mxu0 0.0
    %261 = vmatpush1.msra.mxu0 %v94
    %262 = vmatprep.subr.mxu0 0.0
    %263 = vmatpush1.msra.mxu0 %v93
    %264 = vmatprep.subr.mxu0 0.0
    %265 = vmatpush1.msra.mxu0 %v92
    %266 = vmatprep.subr.mxu0 0.0
    %267 = vmatpush1.msra.mxu0 %v91
    %268 = vmatprep.subr.mxu0 0.0
    %269 = vmatpush1.msra.mxu0 %v90
    %270 = vmatprep.subr.mxu0 0.0
    %271 = vmatpush1.msra.mxu0 %v89
    %272 = vmatprep.subr.mxu0 0.0
    %273 = vmatpush1.msra.mxu0 %v88
    %274 = vmatprep.subr.mxu0 0.0
    %275 = vmatpush1.msra.mxu0 %v87
    %276 = vmatprep.subr.mxu0 0.0
    %277 = vmatpush2.msra.mxu0 0.0
    %278 = vmatprep.subr.mxu0 0.0
    %279 = vmatpush2.msra.mxu0 0.0
    %280 = vmatprep.subr.mxu0 0.0
    %281 = vmatpush2.msra.mxu0 0.0
    %282 = vmatprep.subr.mxu0 0.0
    %283 = vmatpush2.msra.mxu0 0.0
    %284 = vmatprep.subr.mxu0 0.0
    %285 = vmatpush2.msra.mxu0 0.0
    %286 = vmatprep.subr.mxu0 0.0
    %287 = vmatpush2.msra.mxu0 0.0
    %288 = vmatprep.subr.mxu0 0.0
    %289 = vmatpush2.msra.mxu0 0.0
    %290 = vmatprep.subr.mxu0 0.0
    %291 = vmatpush2.msra.mxu0 0.0
    %292 = vmatprep.subr.mxu0 0.0
    %293 = vmatpush2.msra.mxu0 0.0
    %294 = vmatprep.subr.mxu0 0.0
    %295 = vmatpush2.msra.mxu0 0.0
    %296 = vmatprep.subr.mxu0 0.0
    %297 = vmatpush2.msra.mxu0 0.0
    %298 = vmatprep.subr.mxu0 0.0
    %299 = vmatpush2.msra.mxu0 0.0
    %300 = vmatprep.subr.mxu0 0.0
    %301 = vmatpush2.msra.mxu0 0.0
    %302 = vmatprep.subr.mxu0 0.0
    %303 = vmatpush2.msra.mxu0 0.0
    %304 = vmatprep.subr.mxu0 0.0
    %305 = vmatpush2.msra.mxu0 0.0
    %306 = vmatprep.subr.mxu0 0.0
    %307 = vmatpush2.msra.mxu0 0.0
    %308 = vmatprep.mubr.f32.mxu0 0.0
    %309 = vmatmul.mubr.f32.gmra.mxu0 %v102
    %v310 = vpop.f32.mrf.mxu0
    %v311 = vadd.f32 %v241, %v310
    %v312 = vpop.f32.mrf.mxu0
    %313 = vdwg.mxu0
    %v314 = vmul.f32 %v311, %v311
    %v315 = vsel %vm100, %v314, 0.0
    %316 = vadd.xlane.f32.xlu0 %v315
    %v317 = vpop.xlane.xlu0 %316
    %v318 = vrsqrt.pop %v317
    %v319 = vld [vmem:[%s2] sm:$0xff]
    %v320 = vld [vmem:[%s2 + $0x8] sm:$0xff]
    %v321 = vld [vmem:[%s2 + $0x10] sm:$0xff]
    %v322 = vld [vmem:[%s2 + $0x18] sm:$0xff]
    %v323 = vld [vmem:[%s2 + $0x20] sm:$0xff]
    %v324 = vld [vmem:[%s2 + $0x28] sm:$0xff]
    %v325 = vld [vmem:[%s2 + $0x30] sm:$0xff]
    %v326 = vld [vmem:[%s2 + $0x38] sm:$0xff]
    %v328 = vsel %vm100, %v311, 0
    %330 = vmatprep.subr.mxu0 0.0
    %331 = vmatpush1.msra.mxu0 0.0
    %332 = vmatprep.subr.mxu0 0.0
    %333 = vmatpush1.msra.mxu0 0.0
    %334 = vmatprep.subr.mxu0 0.0
    %335 = vmatpush1.msra.mxu0 0.0
    %336 = vmatprep.subr.mxu0 0.0
    %337 = vmatpush1.msra.mxu0 0.0
    %338 = vmatprep.subr.mxu0 0.0
    %339 = vmatpush1.msra.mxu0 0.0
    %340 = vmatprep.subr.mxu0 0.0
    %341 = vmatpush1.msra.mxu0 0.0
    %342 = vmatprep.subr.mxu0 0.0
    %343 = vmatpush1.msra.mxu0 0.0
    %344 = vmatprep.subr.mxu0 0.0
    %345 = vmatpush1.msra.mxu0 0.0
    %346 = vmatprep.subr.mxu0 0.0
    %347 = vmatpush1.msra.mxu0 %v326
    %348 = vmatprep.subr.mxu0 0.0
    %349 = vmatpush1.msra.mxu0 %v325
    %350 = vmatprep.subr.mxu0 0.0
    %351 = vmatpush1.msra.mxu0 %v324
    %352 = vmatprep.subr.mxu0 0.0
    %353 = vmatpush1.msra.mxu0 %v323
    %354 = vmatprep.subr.mxu0 0.0
    %355 = vmatpush1.msra.mxu0 %v322
    %356 = vmatprep.subr.mxu0 0.0
    %357 = vmatpush1.msra.mxu0 %v321
    %358 = vmatprep.subr.mxu0 0.0
    %359 = vmatpush1.msra.mxu0 %v320
    %360 = vmatprep.subr.mxu0 0.0
    %361 = vmatpush1.msra.mxu0 %v319
    %362 = vmatprep.subr.mxu0 0.0
    %363 = vmatpush2.msra.mxu0 0.0
    %364 = vmatprep.subr.mxu0 0.0
    %365 = vmatpush2.msra.mxu0 0.0
    %366 = vmatprep.subr.mxu0 0.0
    %367 = vmatpush2.msra.mxu0 0.0
    %368 = vmatprep.subr.mxu0 0.0
    %369 = vmatpush2.msra.mxu0 0.0
    %370 = vmatprep.subr.mxu0 0.0
    %371 = vmatpush2.msra.mxu0 0.0
    %372 = vmatprep.subr.mxu0 0.0
    %373 = vmatpush2.msra.mxu0 0.0
    %374 = vmatprep.subr.mxu0 0.0
    %375 = vmatpush2.msra.mxu0 0.0
    %376 = vmatprep.subr.mxu0 0.0
    %377 = vmatpush2.msra.mxu0 0.0
    %378 = vmatprep.subr.mxu0 0.0
    %379 = vmatpush2.msra.mxu0 0.0
    %380 = vmatprep.subr.mxu0 0.0
    %381 = vmatpush2.msra.mxu0 0.0
    %382 = vmatprep.subr.mxu0 0.0
    %383 = vmatpush2.msra.mxu0 0.0
    %384 = vmatprep.subr.mxu0 0.0
    %385 = vmatpush2.msra.mxu0 0.0
    %386 = vmatprep.subr.mxu0 0.0
    %387 = vmatpush2.msra.mxu0 0.0
    %388 = vmatprep.subr.mxu0 0.0
    %389 = vmatpush2.msra.mxu0 0.0
    %390 = vmatprep.subr.mxu0 0.0
    %391 = vmatpush2.msra.mxu0 0.0
    %392 = vmatprep.subr.mxu0 0.0
    %393 = vmatpush2.msra.mxu0 0.0
    %394 = vmatprep.mubr.f32.mxu0 0.0
    %395 = vmatmul.mubr.f32.gmra.mxu0 %v328
    %v396 = vpop.f32.mrf.mxu0
    %v397 = vadd.f32 0.0, %v396
    %v398 = vpop.f32.mrf.mxu0
    %399 = vdwg.mxu0
    %v400 = vmul.f32 %v397, %v318
    %v401 = vld [vmem:[%s3] sm:$0x1]
    %v402 = vlaneseq
    %v403 = vshrl.u32 %v402, 7
    %v404 = vsub.s32 0, %v403
    %v405 = vrot.slane %v401, %v404
    %v406 = vadd.f32 %v400, %v405
    %vm407 = vcmask 326656
    %408 = vst.msk [vmem:[#allocation2] sm:$0xff] %vm407, %v406
    // Predicated region
    $region18: #{tpu_custom_call.1} parent=1 // pred_check
      _
    $region19: #{tpu_custom_call.1} parent=1 // pred_check_branch
      %410 = sbr.rel (0) target = $region21
    $region20: #{tpu_custom_call.1} parent=1 // pred_region
      %s412 = ssub.s32 128, 128
      %413 = vsyncadd [#allocation3], %s412
      %s415 = sshll.u32 [#allocation2], 4
      %s416 = int_to_ptr.vmem [resolvable:$true] %s415
      %418 = dma.vmem_to_hbm [thread:$0]  %s416, 128, %s4, [#allocation3]
    $region21: #{tpu_custom_call.1} parent=1 // pred_fallthru
      _
    // Predicated region
    $region22: #{tpu_custom_call.1} parent=1 // pred_check
      _
    $region23: #{tpu_custom_call.1} parent=1 // pred_check_branch
      %420 = sbr.rel (0) target = $region25
    $region24: #{tpu_custom_call.1} parent=1 // pred_region
      %421 = dma.done [#allocation3], 128
    $region25: #{tpu_custom_call.1} parent=1 // pred_fallthru
      _
    %422 = vsyncpa [#allocation3], 1

</llo_original>
